<compile_context>
chip_gen: v6e
topology: v6e:2x2x1
jax: 0.10.0
libtpu: 0.0.40
codegen_flags: <defaults>
</compile_context>

<pallas_src>
import functools

import numpy as np

import jax
import jax.numpy as jnp
from jax.experimental import pallas as pl
from jax.experimental.pallas import tpu as pltpu


_LANE = 128


def _make_taps_2d(kernel, upsample_factor=1):
    """Reproduces Blur.__init__ buffer construction (numpy, trace-time constants)."""
    k = np.asarray(kernel, dtype=np.float32)
    if k.ndim == 1:
        k = k[None, :] * k[:, None]
    k = k / k.sum()
    if upsample_factor > 1:
        k = k * (upsample_factor ** 2)
    return k


def _blur_sep_kernel(x_ref, o_ref, *, taps_h, taps_w, Ho, Wo):
    # x_ref block: (Hp, Wp, CT) with CT % 128 == 0 (lanes = channels/images)
    # o_ref block: (Ho, Wo, CT)
    xt = x_ref[...].astype(jnp.float32)  # single dtype cast per block
    # Vertical pass: slices along the leading dim are pure addressing.
    acc_v = taps_h[0] * xt[0:Ho]
    for ky in range(1, len(taps_h)):
        acc_v = acc_v + taps_h[ky] * xt[ky:ky + Ho]
    # Horizontal pass on the reduced (Ho, Wp, CT) slab (sublane-dim slices).
    acc = taps_w[0] * acc_v[:, 0:Wo, :]
    for kx in range(1, len(taps_w)):
        acc = acc + taps_w[kx] * acc_v[:, kx:kx + Wo, :]
    o_ref[...] = acc.astype(o_ref.dtype)


def _blur_full_kernel(x_ref, o_ref, *, taps2d, Ho, Wo):
    # Fallback for genuinely 2-D (non-separable) filter taps.
    xt = x_ref[...].astype(jnp.float32)  # single dtype cast per block
    acc = None
    for ky, row in enumerate(taps2d):
        for kx, t in enumerate(row):
            term = t * xt[ky:ky + Ho, kx:kx + Wo, :]
            acc = term if acc is None else acc + term
    o_ref[...] = acc.astype(o_ref.dtype)


def _pick_channel_tile(nc_padded, per_lane_tile_bytes, budget_bytes=4 << 20):
    """Largest channel tile (multiple of 128 dividing nc_padded) within a VMEM budget."""
    nt = nc_padded // _LANE
    mult = 1
    for m in range(1, nt + 1):
        if nt % m == 0 and m * per_lane_tile_bytes <= budget_bytes:
            mult = m
    return _LANE * mult


def blur_forward(x, kernel, pad, upsample_factor=1):
    """Equivalent of Blur(kernel, pad, upsample_factor).forward(x), NCHW input."""
    N, C, H, W = x.shape
    pad0, pad1 = pad

    # upfirdn2d allows negative pads (cropping); split into crop + positive pad.
    c0, c1 = max(-pad0, 0), max(-pad1, 0)
    p0, p1 = max(pad0, 0), max(pad1, 0)
    if c0 or c1:
        x = x[:, :, c0:H - c1, c0:W - c1]
        H, W = x.shape[2], x.shape[3]

    k_np = np.asarray(kernel, dtype=np.float32)
    separable = (k_np.ndim == 1)
    k2d = _make_taps_2d(kernel, upsample_factor)
    kh, kw = k2d.shape

    Hp, Wp = H + p0 + p1, W + p0 + p1
    Ho, Wo = Hp - kh + 1, Wp - kw + 1

    NC = N * C
    NCp = ((NC + _LANE - 1) // _LANE) * _LANE

    itemsize = jnp.dtype(x.dtype).itemsize
    # Double-buffered input + output block bytes per 128-lane channel slab.
    per_lane_tile_bytes = 2 * (Hp * Wp + Ho * Wo) * _LANE * itemsize
    CT = _pick_channel_tile(NCp, per_lane_tile_bytes)
    num_ct = NCp // CT

    # Channel-last lane-dense layout; the spatial zero-pad rides along with this
    # (required) layout transform instead of being a standalone HBM pass.
    # TODO(synk): for very large spatial extents, tile H into slabs with a
    # (kh-1)-row halo instead of holding the full padded image per block.
    x_t = jnp.transpose(x.reshape(NC, H, W), (1, 2, 0))          # (H, W, NC)
    x_t = jnp.pad(x_t, ((p0, p1), (p0, p1), (0, NCp - NC)))      # (Hp, Wp, NCp)

    if separable:
        k1 = k_np / k_np.sum()
        if upsample_factor > 1:
            k1 = k1 * upsample_factor  # per-axis factor; combined = up**2
        taps = tuple(float(v) for v in k1[::-1])  # flipped -> true convolution
        kern = functools.partial(
            _blur_sep_kernel, taps_h=taps, taps_w=taps, Ho=Ho, Wo=Wo)
    else:
        k2f = k2d[::-1, ::-1]
        taps2d = tuple(tuple(float(v) for v in row) for row in k2f)
        kern = functools.partial(_blur_full_kernel, taps2d=taps2d, Ho=Ho, Wo=Wo)

    out_t = pl.pallas_call(
        kern,
        out_shape=jax.ShapeDtypeStruct((Ho, Wo, NCp), x.dtype),
        grid_spec=pltpu.PrefetchScalarGridSpec(
            num_scalar_prefetch=0,
            grid=(num_ct,),
            in_specs=[pl.BlockSpec((Hp, Wp, CT), lambda i: (0, 0, i))],
            out_specs=pl.BlockSpec((Ho, Wo, CT), lambda i: (0, 0, i)),
        ),
        compiler_params=pltpu.CompilerParams(
            dimension_semantics=("parallel",),
            allow_input_fusion=[True],
        ),
    )(x_t)

    out = jnp.transpose(out_t[:, :, :NC], (2, 0, 1)).reshape(N, C, Ho, Wo)
    return out


def _reference_blur(x, kernel, pad, upsample_factor=1):
    """Pure-JAX reference (depthwise correlation with the flipped kernel)."""
    N, C, H, W = x.shape
    k2d = _make_taps_2d(kernel, upsample_factor)
    w = jnp.asarray(np.ascontiguousarray(k2d[::-1, ::-1]))
    filt = jnp.broadcast_to(w[None, None, :, :], (C, 1, *w.shape))
    pad0, pad1 = pad
    return jax.lax.conv_general_dilated(
        x,
        filt,
        window_strides=(1, 1),
        padding=((pad0, pad1), (pad0, pad1)),
        dimension_numbers=("NCHW", "OIHW", "NCHW"),
        feature_group_count=C,
        precision=jax.lax.Precision.HIGHEST,
    )


if __name__ == "__main__":
    key = jax.random.PRNGKey(0)
    N, C, H, W = 2, 4, 16, 16
    x = jax.random.normal(key, (N, C, H, W), dtype=jnp.float32)

    # Separable 1-D taps (typical StyleGAN2 blur) with asymmetric padding.
    taps_1d = [1.0, 3.0, 3.0, 1.0]
    pad = (2, 1)
    out = jax.block_until_ready(blur_forward(x, taps_1d, pad))
    ref = jax.block_until_ready(_reference_blur(x, taps_1d, pad))
    assert out.shape == ref.shape, (out.shape, ref.shape)
    assert jnp.allclose(out, ref, atol=1e-5, rtol=1e-5), float(
        jnp.max(jnp.abs(out - ref)))

    # Non-separable 2-D taps exercise the fallback kernel path.
    taps_2d = [[1.0, 2.0, 1.0], [2.0, 4.0, 2.0], [1.0, 2.0, 1.0]]
    pad2 = (1, 1)
    out2 = jax.block_until_ready(blur_forward(x, taps_2d, pad2))
    ref2 = jax.block_until_ready(_reference_blur(x, taps_2d, pad2))
    assert out2.shape == ref2.shape, (out2.shape, ref2.shape)
    assert jnp.allclose(out2, ref2, atol=1e-5, rtol=1e-5), float(
        jnp.max(jnp.abs(out2 - ref2)))

    print("KERNEL_OK")
</pallas_src>

<mosaic_0001>
module attributes {stable_mosaic.version = 11 : i64} {
  func.func @_blur_sep_kernel(%arg0: i32, %arg1: memref<19x19x128xf32, #tpu.memory_space<vmem>>, %arg2: memref<16x16x128xf32, #tpu.memory_space<vmem>>) attributes {dimension_semantics = [#tpu.dimension_semantics<parallel>], iteration_bounds = array<i64: 1>, scalar_prefetch = 0 : i64, scratch_operands = 0 : i64, tpu.core_type = #tpu.core_type<tc>, window_params = [{transform_indices = @transform_0, window_bounds = array<i64: 19, 19, 128>}, {transform_indices = @transform_1, window_bounds = array<i64: 16, 16, 128>}]} {
    %c0 = arith.constant 0 : index
    %c0_0 = arith.constant 0 : index
    %c0_1 = arith.constant 0 : index
    %0 = vector.load %arg1[%c0, %c0_0, %c0_1] : memref<19x19x128xf32, #tpu.memory_space<vmem>>, vector<19x19x128xf32>
    %1 = vector.extract_strided_slice %0 {offsets = [0, 0, 0], sizes = [16, 19, 128], strides = [1, 1, 1]} : vector<19x19x128xf32> to vector<16x19x128xf32>
    %cst = arith.constant 1.250000e-01 : f32
    %2 = vector.broadcast %cst : f32 to vector<16x19x128xf32>
    %3 = arith.mulf %2, %1 : vector<16x19x128xf32>
    %4 = vector.extract_strided_slice %0 {offsets = [1, 0, 0], sizes = [16, 19, 128], strides = [1, 1, 1]} : vector<19x19x128xf32> to vector<16x19x128xf32>
    %cst_2 = arith.constant 3.750000e-01 : f32
    %5 = vector.broadcast %cst_2 : f32 to vector<16x19x128xf32>
    %6 = arith.mulf %5, %4 : vector<16x19x128xf32>
    %7 = arith.addf %3, %6 : vector<16x19x128xf32>
    %8 = vector.extract_strided_slice %0 {offsets = [2, 0, 0], sizes = [16, 19, 128], strides = [1, 1, 1]} : vector<19x19x128xf32> to vector<16x19x128xf32>
    %cst_3 = arith.constant 3.750000e-01 : f32
    %9 = vector.broadcast %cst_3 : f32 to vector<16x19x128xf32>
    %10 = arith.mulf %9, %8 : vector<16x19x128xf32>
    %11 = arith.addf %7, %10 : vector<16x19x128xf32>
    %12 = vector.extract_strided_slice %0 {offsets = [3, 0, 0], sizes = [16, 19, 128], strides = [1, 1, 1]} : vector<19x19x128xf32> to vector<16x19x128xf32>
    %cst_4 = arith.constant 1.250000e-01 : f32
    %13 = vector.broadcast %cst_4 : f32 to vector<16x19x128xf32>
    %14 = arith.mulf %13, %12 : vector<16x19x128xf32>
    %15 = arith.addf %11, %14 : vector<16x19x128xf32>
    %16 = vector.extract_strided_slice %15 {offsets = [0, 0, 0], sizes = [16, 16, 128], strides = [1, 1, 1]} : vector<16x19x128xf32> to vector<16x16x128xf32>
    %cst_5 = arith.constant 1.250000e-01 : f32
    %17 = vector.broadcast %cst_5 : f32 to vector<16x16x128xf32>
    %18 = arith.mulf %17, %16 : vector<16x16x128xf32>
    %19 = vector.extract_strided_slice %15 {offsets = [0, 1, 0], sizes = [16, 16, 128], strides = [1, 1, 1]} : vector<16x19x128xf32> to vector<16x16x128xf32>
    %cst_6 = arith.constant 3.750000e-01 : f32
    %20 = vector.broadcast %cst_6 : f32 to vector<16x16x128xf32>
    %21 = arith.mulf %20, %19 : vector<16x16x128xf32>
    %22 = arith.addf %18, %21 : vector<16x16x128xf32>
    %23 = vector.extract_strided_slice %15 {offsets = [0, 2, 0], sizes = [16, 16, 128], strides = [1, 1, 1]} : vector<16x19x128xf32> to vector<16x16x128xf32>
    %cst_7 = arith.constant 3.750000e-01 : f32
    %24 = vector.broadcast %cst_7 : f32 to vector<16x16x128xf32>
    %25 = arith.mulf %24, %23 : vector<16x16x128xf32>
    %26 = arith.addf %22, %25 : vector<16x16x128xf32>
    %27 = vector.extract_strided_slice %15 {offsets = [0, 3, 0], sizes = [16, 16, 128], strides = [1, 1, 1]} : vector<16x19x128xf32> to vector<16x16x128xf32>
    %cst_8 = arith.constant 1.250000e-01 : f32
    %28 = vector.broadcast %cst_8 : f32 to vector<16x16x128xf32>
    %29 = arith.mulf %28, %27 : vector<16x16x128xf32>
    %30 = arith.addf %26, %29 : vector<16x16x128xf32>
    %c0_9 = arith.constant 0 : index
    %c0_10 = arith.constant 0 : index
    %c0_11 = arith.constant 0 : index
    %31 = vector.load %arg2[%c0_9, %c0_10, %c0_11] : memref<16x16x128xf32, #tpu.memory_space<vmem>>, vector<16x16x128xf32>
    tpu.vector_store %arg2[%c0_9, %c0_10, %c0_11], %30 {strides = array<i32>} : memref<16x16x128xf32, #tpu.memory_space<vmem>>, vector<16x16x128xf32>,
    return
  }
  func.func @transform_0(%arg0: i32) -> (i32, i32, i32) {
    %c0_i32 = arith.constant 0 : i32
    %c0_i32_0 = arith.constant 0 : i32
    %c0_i32_1 = arith.constant 0 : i32
    return %c0_i32, %c0_i32_0, %arg0 : i32, i32, i32
  }
  func.func @transform_1(%arg0: i32) -> (i32, i32, i32) {
    %c0_i32 = arith.constant 0 : i32
    %c0_i32_0 = arith.constant 0 : i32
    %c0_i32_1 = arith.constant 0 : i32
    return %c0_i32, %c0_i32_0, %arg0 : i32, i32, i32
  }
}

</mosaic_0001>

<llo_original>
// kernel: tpu_custom_call.1
$region0: #{tpu_custom_call.1}
  #allocation0 [shape = 'u32[]', space=smem, size = 0x4, offset = 0x4, fixed_abs, tag = 'smem constant byte address 0x4 - core index']
  #allocation1 [shape = 'u32[144,128]{1,0:T(1,128)}', space=vmem, size = 0x12000, scoped, tag = 'internal scratch']
  %s0 = inlined_call_operand.hbm [shape: f32[19,19,128], index: 0, kind: input, shape index: {}]
  %s1 = inlined_call_operand.hbm [shape: f32[16,16,128], index: 1, kind: output, shape index: {}]
  %s2 = sld [smem:[#allocation0]]
  $region18: #{tpu_custom_call.1} parent=0
    _
  %s4 = ssub.s32 1, %s2
  %s5 = scalar_select 0, %s4, %s2
  $region1: #{tpu_custom_call.1} parent=0
    #allocation2 [shape = 'u8[233472]{0}', space=vmem, size = 0x39000, scoped, tag = 'input window, operand 0, single buffered']
    #allocation3 [shape = 's32[1]{0}', space=sflag, size = 0x4, scoped, tag = 'scoped memory for tpu_custom_call.1']
    #allocation4 [shape = 's32[1]{0}', space=sflag, size = 0x4, scoped, tag = 'scoped memory for tpu_custom_call.1']
    #allocation5 [shape = 'u8[131072]{0}', space=vmem, size = 0x20000, scoped, tag = 'output window, operand 0, single buffered']
    %6 = vsyncpa [#allocation3], 0
    %7 = vsyncpa [#allocation4], 0
    // Predicated region
    $region2: #{tpu_custom_call.1} parent=1 // pred_check
      _
    $region3: #{tpu_custom_call.1} parent=1 // pred_check_branch
      %9 = sbr.rel (0) target = $region5
    $region4: #{tpu_custom_call.1} parent=1 // pred_region
      %s11 = ssub.s32 7296, 7296
      %12 = vsyncadd [#allocation3], %s11
      %s13 = sshll.u32 [#allocation2], 4
      %s14 = int_to_ptr.vmem [resolvable:$true] %s13
      %19 = dma.hbm_to_vmem [thread:$0]  %s0, 7296, %s14, [#allocation3], 128, 128, 8
    $region5: #{tpu_custom_call.1} parent=1 // pred_fallthru
      _
    // Predicated region
    $region6: #{tpu_custom_call.1} parent=1 // pred_check
      _
    $region7: #{tpu_custom_call.1} parent=1 // pred_check_branch
      %21 = sbr.rel (0) target = $region9
    $region8: #{tpu_custom_call.1} parent=1 // pred_region
      %22 = dma.done [#allocation3], 7296
    $region9: #{tpu_custom_call.1} parent=1 // pred_fallthru
      _
    %v23 = vld [vmem:[#allocation2] sm:$0xff]
    %v24 = vld [vmem:[#allocation2 + $0x8] sm:$0xff]
    %v25 = vld [vmem:[#allocation2 + $0x10] sm:$0x7]
    %v26 = vld [vmem:[#allocation2 + $0x18] sm:$0xff]
    %v27 = vld [vmem:[#allocation2 + $0x20] sm:$0xff]
    %v28 = vld [vmem:[#allocation2 + $0x28] sm:$0x7]
    %v29 = vld [vmem:[#allocation2 + $0x30] sm:$0xff]
    %v30 = vld [vmem:[#allocation2 + $0x38] sm:$0xff]
    %v31 = vld [vmem:[#allocation2 + $0x40] sm:$0x7]
    %v32 = vld [vmem:[#allocation2 + $0x48] sm:$0xff]
    %v33 = vld [vmem:[#allocation2 + $0x50] sm:$0xff]
    %v34 = vld [vmem:[#allocation2 + $0x58] sm:$0x7]
    %v35 = vld [vmem:[#allocation2 + $0x60] sm:$0xff]
    %v36 = vld [vmem:[#allocation2 + $0x68] sm:$0xff]
    %v37 = vld [vmem:[#allocation2 + $0x70] sm:$0x7]
    %v38 = vld [vmem:[#allocation2 + $0x78] sm:$0xff]
    %v39 = vld [vmem:[#allocation2 + $0x80] sm:$0xff]
    %v40 = vld [vmem:[#allocation2 + $0x88] sm:$0x7]
    %v41 = vld [vmem:[#allocation2 + $0x90] sm:$0xff]
    %v42 = vld [vmem:[#allocation2 + $0x98] sm:$0xff]
    %v43 = vld [vmem:[#allocation2 + $0xa0] sm:$0x7]
    %v44 = vld [vmem:[#allocation2 + $0xa8] sm:$0xff]
    %v45 = vld [vmem:[#allocation2 + $0xb0] sm:$0xff]
    %v46 = vld [vmem:[#allocation2 + $0xb8] sm:$0x7]
    %v47 = vld [vmem:[#allocation2 + $0xc0] sm:$0xff]
    %v48 = vld [vmem:[#allocation2 + $0xc8] sm:$0xff]
    %v49 = vld [vmem:[#allocation2 + $0xd0] sm:$0x7]
    %v50 = vld [vmem:[#allocation2 + $0xd8] sm:$0xff]
    %v51 = vld [vmem:[#allocation2 + $0xe0] sm:$0xff]
    %v52 = vld [vmem:[#allocation2 + $0xe8] sm:$0x7]
    %v53 = vld [vmem:[#allocation2 + $0xf0] sm:$0xff]
    %v54 = vld [vmem:[#allocation2 + $0xf8] sm:$0xff]
    %v55 = vld [vmem:[#allocation2 + $0x100] sm:$0x7]
    %v56 = vld [vmem:[#allocation2 + $0x108] sm:$0xff]
    %v57 = vld [vmem:[#allocation2 + $0x110] sm:$0xff]
    %v58 = vld [vmem:[#allocation2 + $0x118] sm:$0x7]
    %v59 = vld [vmem:[#allocation2 + $0x120] sm:$0xff]
    %v60 = vld [vmem:[#allocation2 + $0x128] sm:$0xff]
    %v61 = vld [vmem:[#allocation2 + $0x130] sm:$0x7]
    %v62 = vld [vmem:[#allocation2 + $0x138] sm:$0xff]
    %v63 = vld [vmem:[#allocation2 + $0x140] sm:$0xff]
    %v64 = vld [vmem:[#allocation2 + $0x148] sm:$0x7]
    %v65 = vld [vmem:[#allocation2 + $0x150] sm:$0xff]
    %v66 = vld [vmem:[#allocation2 + $0x158] sm:$0xff]
    %v67 = vld [vmem:[#allocation2 + $0x160] sm:$0x7]
    %v68 = vld [vmem:[#allocation2 + $0x168] sm:$0xff]
    %v69 = vld [vmem:[#allocation2 + $0x170] sm:$0xff]
    %v70 = vld [vmem:[#allocation2 + $0x178] sm:$0x7]
    %v71 = vld [vmem:[#allocation2 + $0x180] sm:$0xff]
    %v72 = vld [vmem:[#allocation2 + $0x188] sm:$0xff]
    %v73 = vld [vmem:[#allocation2 + $0x190] sm:$0x7]
    %v74 = vld [vmem:[#allocation2 + $0x198] sm:$0xff]
    %v75 = vld [vmem:[#allocation2 + $0x1a0] sm:$0xff]
    %v76 = vld [vmem:[#allocation2 + $0x1a8] sm:$0x7]
    %v77 = vld [vmem:[#allocation2 + $0x1b0] sm:$0xff]
    %v78 = vld [vmem:[#allocation2 + $0x1b8] sm:$0xff]
    %v79 = vld [vmem:[#allocation2 + $0x1c0] sm:$0x7]
    %v80 = vmul.f32 %v23, 0.125
    %v81 = vmul.f32 %v24, 0.125
    %v82 = vmul.f32 %v25, 0.125
    %v83 = vmul.f32 %v26, 0.125
    %v84 = vmul.f32 %v27, 0.125
    %v85 = vmul.f32 %v28, 0.125
    %v86 = vmul.f32 %v29, 0.125
    %v87 = vmul.f32 %v30, 0.125
    %v88 = vmul.f32 %v31, 0.125
    %v89 = vmul.f32 %v32, 0.125
    %v90 = vmul.f32 %v33, 0.125
    %v91 = vmul.f32 %v34, 0.125
    %v92 = vmul.f32 %v35, 0.125
    %v93 = vmul.f32 %v36, 0.125
    %v94 = vmul.f32 %v37, 0.125
    %v95 = vmul.f32 %v38, 0.125
    %v96 = vmul.f32 %v39, 0.125
    %v97 = vmul.f32 %v40, 0.125
    %v98 = vmul.f32 %v41, 0.125
    %v99 = vmul.f32 %v42, 0.125
    %v100 = vmul.f32 %v43, 0.125
    %v101 = vmul.f32 %v44, 0.125
    %v102 = vmul.f32 %v45, 0.125
    %v103 = vmul.f32 %v46, 0.125
    %v104 = vmul.f32 %v47, 0.125
    %v105 = vmul.f32 %v48, 0.125
    %v106 = vmul.f32 %v49, 0.125
    %v107 = vmul.f32 %v50, 0.125
    %v108 = vmul.f32 %v51, 0.125
    %v109 = vmul.f32 %v52, 0.125
    %v110 = vmul.f32 %v53, 0.125
    %v111 = vmul.f32 %v54, 0.125
    %v112 = vmul.f32 %v55, 0.125
    %v113 = vmul.f32 %v56, 0.125
    %v114 = vmul.f32 %v57, 0.125
    %v115 = vmul.f32 %v58, 0.125
    %v116 = vmul.f32 %v59, 0.125
    %v117 = vmul.f32 %v60, 0.125
    %v118 = vmul.f32 %v61, 0.125
    %v119 = vmul.f32 %v62, 0.125
    %v120 = vmul.f32 %v63, 0.125
    %v121 = vmul.f32 %v64, 0.125
    %v122 = vmul.f32 %v65, 0.125
    %v123 = vmul.f32 %v66, 0.125
    %v124 = vmul.f32 %v67, 0.125
    %v125 = vmul.f32 %v68, 0.125
    %v126 = vmul.f32 %v69, 0.125
    %v127 = vmul.f32 %v70, 0.125
    %v128 = vmul.f32 %v26, 0.375
    %v129 = vmul.f32 %v27, 0.375
    %v130 = vmul.f32 %v28, 0.375
    %v131 = vmul.f32 %v29, 0.375
    %v132 = vmul.f32 %v30, 0.375
    %v133 = vmul.f32 %v31, 0.375
    %v134 = vmul.f32 %v32, 0.375
    %v135 = vmul.f32 %v33, 0.375
    %v136 = vmul.f32 %v34, 0.375
    %v137 = vmul.f32 %v35, 0.375
    %v138 = vmul.f32 %v36, 0.375
    %v139 = vmul.f32 %v37, 0.375
    %v140 = vmul.f32 %v38, 0.375
    %v141 = vmul.f32 %v39, 0.375
    %v142 = vmul.f32 %v40, 0.375
    %v143 = vmul.f32 %v41, 0.375
    %v144 = vmul.f32 %v42, 0.375
    %v145 = vmul.f32 %v43, 0.375
    %v146 = vmul.f32 %v44, 0.375
    %v147 = vmul.f32 %v45, 0.375
    %v148 = vmul.f32 %v46, 0.375
    %v149 = vmul.f32 %v47, 0.375
    %v150 = vmul.f32 %v48, 0.375
    %v151 = vmul.f32 %v49, 0.375
    %v152 = vmul.f32 %v50, 0.375
    %v153 = vmul.f32 %v51, 0.375
    %v154 = vmul.f32 %v52, 0.375
    %v155 = vmul.f32 %v53, 0.375
    %v156 = vmul.f32 %v54, 0.375
    %v157 = vmul.f32 %v55, 0.375
    %v158 = vmul.f32 %v56, 0.375
    %v159 = vmul.f32 %v57, 0.375
    %v160 = vmul.f32 %v58, 0.375
    %v161 = vmul.f32 %v59, 0.375
    %v162 = vmul.f32 %v60, 0.375
    %v163 = vmul.f32 %v61, 0.375
    %v164 = vmul.f32 %v62, 0.375
    %v165 = vmul.f32 %v63, 0.375
    %v166 = vmul.f32 %v64, 0.375
    %v167 = vmul.f32 %v65, 0.375
    %v168 = vmul.f32 %v66, 0.375
    %v169 = vmul.f32 %v67, 0.375
    %v170 = vmul.f32 %v68, 0.375
    %v171 = vmul.f32 %v69, 0.375
    %v172 = vmul.f32 %v70, 0.375
    %v173 = vmul.f32 %v71, 0.375
    %v174 = vmul.f32 %v72, 0.375
    %v175 = vmul.f32 %v73, 0.375
    %v176 = vadd.f32 %v80, %v128
    %v177 = vadd.f32 %v81, %v129
    %v178 = vadd.f32 %v82, %v130
    %v179 = vadd.f32 %v83, %v131
    %v180 = vadd.f32 %v84, %v132
    %v181 = vadd.f32 %v85, %v133
    %v182 = vadd.f32 %v86, %v134
    %v183 = vadd.f32 %v87, %v135
    %v184 = vadd.f32 %v88, %v136
    %v185 = vadd.f32 %v89, %v137
    %v186 = vadd.f32 %v90, %v138
    %v187 = vadd.f32 %v91, %v139
    %v188 = vadd.f32 %v92, %v140
    %v189 = vadd.f32 %v93, %v141
    %v190 = vadd.f32 %v94, %v142
    %v191 = vadd.f32 %v95, %v143
    %v192 = vadd.f32 %v96, %v144
    %v193 = vadd.f32 %v97, %v145
    %v194 = vadd.f32 %v98, %v146
    %v195 = vadd.f32 %v99, %v147
    %v196 = vadd.f32 %v100, %v148
    %v197 = vadd.f32 %v101, %v149
    %v198 = vadd.f32 %v102, %v150
    %v199 = vadd.f32 %v103, %v151
    %v200 = vadd.f32 %v104, %v152
    %v201 = vadd.f32 %v105, %v153
    %v202 = vadd.f32 %v106, %v154
    %v203 = vadd.f32 %v107, %v155
    %v204 = vadd.f32 %v108, %v156
    %v205 = vadd.f32 %v109, %v157
    %v206 = vadd.f32 %v110, %v158
    %v207 = vadd.f32 %v111, %v159
    %v208 = vadd.f32 %v112, %v160
    %v209 = vadd.f32 %v113, %v161
    %v210 = vadd.f32 %v114, %v162
    %v211 = vadd.f32 %v115, %v163
    %v212 = vadd.f32 %v116, %v164
    %v213 = vadd.f32 %v117, %v165
    %v214 = vadd.f32 %v118, %v166
    %v215 = vadd.f32 %v119, %v167
    %v216 = vadd.f32 %v120, %v168
    %v217 = vadd.f32 %v121, %v169
    %v218 = vadd.f32 %v122, %v170
    %v219 = vadd.f32 %v123, %v171
    %v220 = vadd.f32 %v124, %v172
    %v221 = vadd.f32 %v125, %v173
    %v222 = vadd.f32 %v126, %v174
    %v223 = vadd.f32 %v127, %v175
    %v224 = vmul.f32 %v74, 0.375
    %v225 = vmul.f32 %v75, 0.375
    %v226 = vmul.f32 %v76, 0.375
    %v227 = vadd.f32 %v176, %v131
    %v228 = vadd.f32 %v177, %v132
    %v229 = vadd.f32 %v178, %v133
    %v230 = vadd.f32 %v179, %v134
    %v231 = vadd.f32 %v180, %v135
    %v232 = vadd.f32 %v181, %v136
    %v233 = vadd.f32 %v182, %v137
    %v234 = vadd.f32 %v183, %v138
    %v235 = vadd.f32 %v184, %v139
    %v236 = vadd.f32 %v185, %v140
    %v237 = vadd.f32 %v186, %v141
    %v238 = vadd.f32 %v187, %v142
    %v239 = vadd.f32 %v188, %v143
    %v240 = vadd.f32 %v189, %v144
    %v241 = vadd.f32 %v190, %v145
    %v242 = vadd.f32 %v191, %v146
    %v243 = vadd.f32 %v192, %v147
    %v244 = vadd.f32 %v193, %v148
    %v245 = vadd.f32 %v194, %v149
    %v246 = vadd.f32 %v195, %v150
    %v247 = vadd.f32 %v196, %v151
    %v248 = vadd.f32 %v197, %v152
    %v249 = vadd.f32 %v198, %v153
    %v250 = vadd.f32 %v199, %v154
    %v251 = vadd.f32 %v200, %v155
    %v252 = vadd.f32 %v201, %v156
    %v253 = vadd.f32 %v202, %v157
    %v254 = vadd.f32 %v203, %v158
    %v255 = vadd.f32 %v204, %v159
    %v256 = vadd.f32 %v205, %v160
    %v257 = vadd.f32 %v206, %v161
    %v258 = vadd.f32 %v207, %v162
    %v259 = vadd.f32 %v208, %v163
    %v260 = vadd.f32 %v209, %v164
    %v261 = vadd.f32 %v210, %v165
    %v262 = vadd.f32 %v211, %v166
    %v263 = vadd.f32 %v212, %v167
    %v264 = vadd.f32 %v213, %v168
    %v265 = vadd.f32 %v214, %v169
    %v266 = vadd.f32 %v215, %v170
    %v267 = vadd.f32 %v216, %v171
    %v268 = vadd.f32 %v217, %v172
    %v269 = vadd.f32 %v218, %v173
    %v270 = vadd.f32 %v219, %v174
    %v271 = vadd.f32 %v220, %v175
    %v272 = vadd.f32 %v221, %v224
    %v273 = vadd.f32 %v222, %v225
    %v274 = vadd.f32 %v223, %v226
    %v275 = vmul.f32 %v71, 0.125
    %v276 = vmul.f32 %v72, 0.125
    %v277 = vmul.f32 %v73, 0.125
    %v278 = vmul.f32 %v74, 0.125
    %v279 = vmul.f32 %v75, 0.125
    %v280 = vmul.f32 %v76, 0.125
    %v281 = vmul.f32 %v77, 0.125
    %v282 = vmul.f32 %v78, 0.125
    %v283 = vmul.f32 %v79, 0.125
    %v284 = vadd.f32 %v227, %v89
    %v285 = vadd.f32 %v228, %v90
    %v286 = vadd.f32 %v229, %v91
    %v287 = vadd.f32 %v230, %v92
    %v288 = vadd.f32 %v231, %v93
    %v289 = vadd.f32 %v232, %v94
    %v290 = vadd.f32 %v233, %v95
    %v291 = vadd.f32 %v234, %v96
    %v292 = vadd.f32 %v235, %v97
    %v293 = vadd.f32 %v236, %v98
    %v294 = vadd.f32 %v237, %v99
    %v295 = vadd.f32 %v238, %v100
    %v296 = vadd.f32 %v239, %v101
    %v297 = vadd.f32 %v240, %v102
    %v298 = vadd.f32 %v241, %v103
    %v299 = vadd.f32 %v242, %v104
    %v300 = vadd.f32 %v243, %v105
    %v301 = vadd.f32 %v244, %v106
    %v302 = vadd.f32 %v245, %v107
    %v303 = vadd.f32 %v246, %v108
    %v304 = vadd.f32 %v247, %v109
    %v305 = vadd.f32 %v248, %v110
    %v306 = vadd.f32 %v249, %v111
    %v307 = vadd.f32 %v250, %v112
    %v308 = vadd.f32 %v251, %v113
    %v309 = vadd.f32 %v252, %v114
    %v310 = vadd.f32 %v253, %v115
    %v311 = vadd.f32 %v254, %v116
    %v312 = vadd.f32 %v255, %v117
    %v313 = vadd.f32 %v256, %v118
    %v314 = vadd.f32 %v257, %v119
    %v315 = vadd.f32 %v258, %v120
    %v316 = vadd.f32 %v259, %v121
    %v317 = vadd.f32 %v260, %v122
    %v318 = vadd.f32 %v261, %v123
    %v319 = vadd.f32 %v262, %v124
    %v320 = vadd.f32 %v263, %v125
    %v321 = vadd.f32 %v264, %v126
    %v322 = vadd.f32 %v265, %v127
    %v323 = vadd.f32 %v266, %v275
    %v324 = vadd.f32 %v267, %v276
    %v325 = vadd.f32 %v268, %v277
    %v326 = vadd.f32 %v269, %v278
    %v327 = vadd.f32 %v270, %v279
    %v328 = vadd.f32 %v271, %v280
    %v329 = vadd.f32 %v272, %v281
    %v330 = vadd.f32 %v273, %v282
    %v331 = vadd.f32 %v274, %v283
    %v332 = vmul.f32 %v284, 0.125
    %v333 = vmul.f32 %v285, 0.125
    %v334 = vmul.f32 %v287, 0.125
    %v335 = vmul.f32 %v288, 0.125
    %v336 = vmul.f32 %v290, 0.125
    %v337 = vmul.f32 %v291, 0.125
    %v338 = vmul.f32 %v293, 0.125
    %v339 = vmul.f32 %v294, 0.125
    %v340 = vmul.f32 %v296, 0.125
    %v341 = vmul.f32 %v297, 0.125
    %v342 = vmul.f32 %v299, 0.125
    %v343 = vmul.f32 %v300, 0.125
    %v344 = vmul.f32 %v302, 0.125
    %v345 = vmul.f32 %v303, 0.125
    %v346 = vmul.f32 %v305, 0.125
    %v347 = vmul.f32 %v306, 0.125
    %v348 = vmul.f32 %v308, 0.125
    %v349 = vmul.f32 %v309, 0.125
    %v350 = vmul.f32 %v311, 0.125
    %v351 = vmul.f32 %v312, 0.125
    %v352 = vmul.f32 %v314, 0.125
    %v353 = vmul.f32 %v315, 0.125
    %v354 = vmul.f32 %v317, 0.125
    %v355 = vmul.f32 %v318, 0.125
    %v356 = vmul.f32 %v320, 0.125
    %v357 = vmul.f32 %v321, 0.125
    %v358 = vmul.f32 %v323, 0.125
    %v359 = vmul.f32 %v324, 0.125
    %v360 = vmul.f32 %v326, 0.125
    %v361 = vmul.f32 %v327, 0.125
    %v362 = vmul.f32 %v329, 0.125
    %v363 = vmul.f32 %v330, 0.125
    %v364 = vmul.f32 %v284, 0.375
    %v365 = vmul.f32 %v285, 0.375
    %v366 = vmul.f32 %v286, 0.375
    %v367 = vmul.f32 %v287, 0.375
    %v368 = vmul.f32 %v288, 0.375
    %v369 = vmul.f32 %v289, 0.375
    %v370 = vmul.f32 %v290, 0.375
    %v371 = vmul.f32 %v291, 0.375
    %v372 = vmul.f32 %v292, 0.375
    %v373 = vmul.f32 %v293, 0.375
    %v374 = vmul.f32 %v294, 0.375
    %v375 = vmul.f32 %v295, 0.375
    %v376 = vmul.f32 %v296, 0.375
    %v377 = vmul.f32 %v297, 0.375
    %v378 = vmul.f32 %v298, 0.375
    %v379 = vmul.f32 %v299, 0.375
    %v380 = vmul.f32 %v300, 0.375
    %v381 = vmul.f32 %v301, 0.375
    %v382 = vmul.f32 %v302, 0.375
    %v383 = vmul.f32 %v303, 0.375
    %v384 = vmul.f32 %v304, 0.375
    %v385 = vmul.f32 %v305, 0.375
    %v386 = vmul.f32 %v306, 0.375
    %v387 = vmul.f32 %v307, 0.375
    %v388 = vmul.f32 %v308, 0.375
    %v389 = vmul.f32 %v309, 0.375
    %v390 = vmul.f32 %v310, 0.375
    %v391 = vmul.f32 %v311, 0.375
    %v392 = vmul.f32 %v312, 0.375
    %v393 = vmul.f32 %v313, 0.375
    %v394 = vmul.f32 %v314, 0.375
    %v395 = vmul.f32 %v315, 0.375
    %v396 = vmul.f32 %v316, 0.375
    %v397 = vmul.f32 %v317, 0.375
    %v398 = vmul.f32 %v318, 0.375
    %v399 = vmul.f32 %v319, 0.375
    %v400 = vmul.f32 %v320, 0.375
    %v401 = vmul.f32 %v321, 0.375
    %v402 = vmul.f32 %v322, 0.375
    %v403 = vmul.f32 %v323, 0.375
    %v404 = vmul.f32 %v324, 0.375
    %v405 = vmul.f32 %v325, 0.375
    %v406 = vmul.f32 %v326, 0.375
    %v407 = vmul.f32 %v327, 0.375
    %v408 = vmul.f32 %v328, 0.375
    %v409 = vmul.f32 %v329, 0.375
    %v410 = vmul.f32 %v330, 0.375
    %v411 = vmul.f32 %v331, 0.375
    %vm460 = vcmask 1046528
    %v461 = vrot.slane %v364, 1
    %v462 = vrot.slane %v365, 1
    %v463 = vsel %vm460, %v461, %v462
    %v464 = vrot.slane %v366, 1
    %v465 = vsel %vm460, %v462, %v464
    %v466 = vrot.slane %v367, 1
    %v467 = vrot.slane %v368, 1
    %v468 = vsel %vm460, %v466, %v467
    %v469 = vrot.slane %v369, 1
    %v470 = vsel %vm460, %v467, %v469
    %v471 = vrot.slane %v370, 1
    %v472 = vrot.slane %v371, 1
    %v473 = vsel %vm460, %v471, %v472
    %v474 = vrot.slane %v372, 1
    %v475 = vsel %vm460, %v472, %v474
    %v476 = vrot.slane %v373, 1
    %v477 = vrot.slane %v374, 1
    %v478 = vsel %vm460, %v476, %v477
    %v479 = vrot.slane %v375, 1
    %v480 = vsel %vm460, %v477, %v479
    %v481 = vrot.slane %v376, 1
    %v482 = vrot.slane %v377, 1
    %v483 = vsel %vm460, %v481, %v482
    %v484 = vrot.slane %v378, 1
    %v485 = vsel %vm460, %v482, %v484
    %v486 = vrot.slane %v379, 1
    %v487 = vrot.slane %v380, 1
    %v488 = vsel %vm460, %v486, %v487
    %v489 = vrot.slane %v381, 1
    %v490 = vsel %vm460, %v487, %v489
    %v491 = vrot.slane %v382, 1
    %v492 = vrot.slane %v383, 1
    %v493 = vsel %vm460, %v491, %v492
    %v494 = vrot.slane %v384, 1
    %v495 = vsel %vm460, %v492, %v494
    %v496 = vrot.slane %v385, 1
    %v497 = vrot.slane %v386, 1
    %v498 = vsel %vm460, %v496, %v497
    %v499 = vrot.slane %v387, 1
    %v500 = vsel %vm460, %v497, %v499
    %v501 = vrot.slane %v388, 1
    %v502 = vrot.slane %v389, 1
    %v503 = vsel %vm460, %v501, %v502
    %v504 = vrot.slane %v390, 1
    %v505 = vsel %vm460, %v502, %v504
    %v506 = vrot.slane %v391, 1
    %v507 = vrot.slane %v392, 1
    %v508 = vsel %vm460, %v506, %v507
    %v509 = vrot.slane %v393, 1
    %v510 = vsel %vm460, %v507, %v509
    %v511 = vrot.slane %v394, 1
    %v512 = vrot.slane %v395, 1
    %v513 = vsel %vm460, %v511, %v512
    %v514 = vrot.slane %v396, 1
    %v515 = vsel %vm460, %v512, %v514
    %v516 = vrot.slane %v397, 1
    %v517 = vrot.slane %v398, 1
    %v518 = vsel %vm460, %v516, %v517
    %v519 = vrot.slane %v399, 1
    %v520 = vsel %vm460, %v517, %v519
    %v521 = vrot.slane %v400, 1
    %v522 = vrot.slane %v401, 1
    %v523 = vsel %vm460, %v521, %v522
    %v524 = vrot.slane %v402, 1
    %v525 = vsel %vm460, %v522, %v524
    %v526 = vrot.slane %v403, 1
    %v527 = vrot.slane %v404, 1
    %v528 = vsel %vm460, %v526, %v527
    %v529 = vrot.slane %v405, 1
    %v530 = vsel %vm460, %v527, %v529
    %v531 = vrot.slane %v406, 1
    %v532 = vrot.slane %v407, 1
    %v533 = vsel %vm460, %v531, %v532
    %v534 = vrot.slane %v408, 1
    %v535 = vsel %vm460, %v532, %v534
    %v536 = vrot.slane %v409, 1
    %v537 = vrot.slane %v410, 1
    %v538 = vsel %vm460, %v536, %v537
    %v539 = vrot.slane %v411, 1
    %v540 = vsel %vm460, %v537, %v539
    %v573 = vadd.f32 %v332, %v463
    %v574 = vadd.f32 %v333, %v465
    %v575 = vadd.f32 %v334, %v468
    %v576 = vadd.f32 %v335, %v470
    %v577 = vadd.f32 %v336, %v473
    %v578 = vadd.f32 %v337, %v475
    %v579 = vadd.f32 %v338, %v478
    %v580 = vadd.f32 %v339, %v480
    %v581 = vadd.f32 %v340, %v483
    %v582 = vadd.f32 %v341, %v485
    %v583 = vadd.f32 %v342, %v488
    %v584 = vadd.f32 %v343, %v490
    %v585 = vadd.f32 %v344, %v493
    %v586 = vadd.f32 %v345, %v495
    %v587 = vadd.f32 %v346, %v498
    %v588 = vadd.f32 %v347, %v500
    %v589 = vadd.f32 %v348, %v503
    %v590 = vadd.f32 %v349, %v505
    %v591 = vadd.f32 %v350, %v508
    %v592 = vadd.f32 %v351, %v510
    %v593 = vadd.f32 %v352, %v513
    %v594 = vadd.f32 %v353, %v515
    %v595 = vadd.f32 %v354, %v518
    %v596 = vadd.f32 %v355, %v520
    %v597 = vadd.f32 %v356, %v523
    %v598 = vadd.f32 %v357, %v525
    %v599 = vadd.f32 %v358, %v528
    %v600 = vadd.f32 %v359, %v530
    %v601 = vadd.f32 %v360, %v533
    %v602 = vadd.f32 %v361, %v535
    %v603 = vadd.f32 %v362, %v538
    %v604 = vadd.f32 %v363, %v540
    %vm605 = vcmask 1045504
    %v606 = vrot.slane %v364, 2
    %v607 = vrot.slane %v365, 2
    %v608 = vsel %vm605, %v606, %v607
    %v609 = vrot.slane %v366, 2
    %v610 = vsel %vm605, %v607, %v609
    %v611 = vrot.slane %v367, 2
    %v612 = vrot.slane %v368, 2
    %v613 = vsel %vm605, %v611, %v612
    %v614 = vrot.slane %v369, 2
    %v615 = vsel %vm605, %v612, %v614
    %v616 = vrot.slane %v370, 2
    %v617 = vrot.slane %v371, 2
    %v618 = vsel %vm605, %v616, %v617
    %v619 = vrot.slane %v372, 2
    %v620 = vsel %vm605, %v617, %v619
    %v621 = vrot.slane %v373, 2
    %v622 = vrot.slane %v374, 2
    %v623 = vsel %vm605, %v621, %v622
    %v624 = vrot.slane %v375, 2
    %v625 = vsel %vm605, %v622, %v624
    %v626 = vrot.slane %v376, 2
    %v627 = vrot.slane %v377, 2
    %v628 = vsel %vm605, %v626, %v627
    %v629 = vrot.slane %v378, 2
    %v630 = vsel %vm605, %v627, %v629
    %v631 = vrot.slane %v379, 2
    %v632 = vrot.slane %v380, 2
    %v633 = vsel %vm605, %v631, %v632
    %v634 = vrot.slane %v381, 2
    %v635 = vsel %vm605, %v632, %v634
    %v636 = vrot.slane %v382, 2
    %v637 = vrot.slane %v383, 2
    %v638 = vsel %vm605, %v636, %v637
    %v639 = vrot.slane %v384, 2
    %v640 = vsel %vm605, %v637, %v639
    %v641 = vrot.slane %v385, 2
    %v642 = vrot.slane %v386, 2
    %v643 = vsel %vm605, %v641, %v642
    %v644 = vrot.slane %v387, 2
    %v645 = vsel %vm605, %v642, %v644
    %v646 = vrot.slane %v388, 2
    %v647 = vrot.slane %v389, 2
    %v648 = vsel %vm605, %v646, %v647
    %v649 = vrot.slane %v390, 2
    %v650 = vsel %vm605, %v647, %v649
    %v651 = vrot.slane %v391, 2
    %v652 = vrot.slane %v392, 2
    %v653 = vsel %vm605, %v651, %v652
    %v654 = vrot.slane %v393, 2
    %v655 = vsel %vm605, %v652, %v654
    %v656 = vrot.slane %v394, 2
    %v657 = vrot.slane %v395, 2
    %v658 = vsel %vm605, %v656, %v657
    %v659 = vrot.slane %v396, 2
    %v660 = vsel %vm605, %v657, %v659
    %v661 = vrot.slane %v397, 2
    %v662 = vrot.slane %v398, 2
    %v663 = vsel %vm605, %v661, %v662
    %v664 = vrot.slane %v399, 2
    %v665 = vsel %vm605, %v662, %v664
    %v666 = vrot.slane %v400, 2
    %v667 = vrot.slane %v401, 2
    %v668 = vsel %vm605, %v666, %v667
    %v669 = vrot.slane %v402, 2
    %v670 = vsel %vm605, %v667, %v669
    %v671 = vrot.slane %v403, 2
    %v672 = vrot.slane %v404, 2
    %v673 = vsel %vm605, %v671, %v672
    %v674 = vrot.slane %v405, 2
    %v675 = vsel %vm605, %v672, %v674
    %v676 = vrot.slane %v406, 2
    %v677 = vrot.slane %v407, 2
    %v678 = vsel %vm605, %v676, %v677
    %v679 = vrot.slane %v408, 2
    %v680 = vsel %vm605, %v677, %v679
    %v681 = vrot.slane %v409, 2
    %v682 = vrot.slane %v410, 2
    %v683 = vsel %vm605, %v681, %v682
    %v684 = vrot.slane %v411, 2
    %v685 = vsel %vm605, %v682, %v684
    %v718 = vadd.f32 %v573, %v608
    %v719 = vadd.f32 %v574, %v610
    %v720 = vadd.f32 %v575, %v613
    %v721 = vadd.f32 %v576, %v615
    %v722 = vadd.f32 %v577, %v618
    %v723 = vadd.f32 %v578, %v620
    %v724 = vadd.f32 %v579, %v623
    %v725 = vadd.f32 %v580, %v625
    %v726 = vadd.f32 %v581, %v628
    %v727 = vadd.f32 %v582, %v630
    %v728 = vadd.f32 %v583, %v633
    %v729 = vadd.f32 %v584, %v635
    %v730 = vadd.f32 %v585, %v638
    %v731 = vadd.f32 %v586, %v640
    %v732 = vadd.f32 %v587, %v643
    %v733 = vadd.f32 %v588, %v645
    %v734 = vadd.f32 %v589, %v648
    %v735 = vadd.f32 %v590, %v650
    %v736 = vadd.f32 %v591, %v653
    %v737 = vadd.f32 %v592, %v655
    %v738 = vadd.f32 %v593, %v658
    %v739 = vadd.f32 %v594, %v660
    %v740 = vadd.f32 %v595, %v663
    %v741 = vadd.f32 %v596, %v665
    %v742 = vadd.f32 %v597, %v668
    %v743 = vadd.f32 %v598, %v670
    %v744 = vadd.f32 %v599, %v673
    %v745 = vadd.f32 %v600, %v675
    %v746 = vadd.f32 %v601, %v678
    %v747 = vadd.f32 %v602, %v680
    %v748 = vadd.f32 %v603, %v683
    %v749 = vadd.f32 %v604, %v685
    %v750 = vmul.f32 %v286, 0.125
    %v751 = vmul.f32 %v289, 0.125
    %v752 = vmul.f32 %v292, 0.125
    %v753 = vmul.f32 %v295, 0.125
    %v754 = vmul.f32 %v298, 0.125
    %v755 = vmul.f32 %v301, 0.125
    %v756 = vmul.f32 %v304, 0.125
    %v757 = vmul.f32 %v307, 0.125
    %v758 = vmul.f32 %v310, 0.125
    %v759 = vmul.f32 %v313, 0.125
    %v760 = vmul.f32 %v316, 0.125
    %v761 = vmul.f32 %v319, 0.125
    %v762 = vmul.f32 %v322, 0.125
    %v763 = vmul.f32 %v325, 0.125
    %v764 = vmul.f32 %v328, 0.125
    %v765 = vmul.f32 %v331, 0.125
    %vm814 = vcmask 1044480
    %v815 = vrot.slane %v332, 3
    %v816 = vrot.slane %v333, 3
    %v817 = vsel %vm814, %v815, %v816
    %v818 = vrot.slane %v750, 3
    %v819 = vsel %vm814, %v816, %v818
    %v820 = vrot.slane %v334, 3
    %v821 = vrot.slane %v335, 3
    %v822 = vsel %vm814, %v820, %v821
    %v823 = vrot.slane %v751, 3
    %v824 = vsel %vm814, %v821, %v823
    %v825 = vrot.slane %v336, 3
    %v826 = vrot.slane %v337, 3
    %v827 = vsel %vm814, %v825, %v826
    %v828 = vrot.slane %v752, 3
    %v829 = vsel %vm814, %v826, %v828
    %v830 = vrot.slane %v338, 3
    %v831 = vrot.slane %v339, 3
    %v832 = vsel %vm814, %v830, %v831
    %v833 = vrot.slane %v753, 3
    %v834 = vsel %vm814, %v831, %v833
    %v835 = vrot.slane %v340, 3
    %v836 = vrot.slane %v341, 3
    %v837 = vsel %vm814, %v835, %v836
    %v838 = vrot.slane %v754, 3
    %v839 = vsel %vm814, %v836, %v838
    %v840 = vrot.slane %v342, 3
    %v841 = vrot.slane %v343, 3
    %v842 = vsel %vm814, %v840, %v841
    %v843 = vrot.slane %v755, 3
    %v844 = vsel %vm814, %v841, %v843
    %v845 = vrot.slane %v344, 3
    %v846 = vrot.slane %v345, 3
    %v847 = vsel %vm814, %v845, %v846
    %v848 = vrot.slane %v756, 3
    %v849 = vsel %vm814, %v846, %v848
    %v850 = vrot.slane %v346, 3
    %v851 = vrot.slane %v347, 3
    %v852 = vsel %vm814, %v850, %v851
    %v853 = vrot.slane %v757, 3
    %v854 = vsel %vm814, %v851, %v853
    %v855 = vrot.slane %v348, 3
    %v856 = vrot.slane %v349, 3
    %v857 = vsel %vm814, %v855, %v856
    %v858 = vrot.slane %v758, 3
    %v859 = vsel %vm814, %v856, %v858
    %v860 = vrot.slane %v350, 3
    %v861 = vrot.slane %v351, 3
    %v862 = vsel %vm814, %v860, %v861
    %v863 = vrot.slane %v759, 3
    %v864 = vsel %vm814, %v861, %v863
    %v865 = vrot.slane %v352, 3
    %v866 = vrot.slane %v353, 3
    %v867 = vsel %vm814, %v865, %v866
    %v868 = vrot.slane %v760, 3
    %v869 = vsel %vm814, %v866, %v868
    %v870 = vrot.slane %v354, 3
    %v871 = vrot.slane %v355, 3
    %v872 = vsel %vm814, %v870, %v871
    %v873 = vrot.slane %v761, 3
    %v874 = vsel %vm814, %v871, %v873
    %v875 = vrot.slane %v356, 3
    %v876 = vrot.slane %v357, 3
    %v877 = vsel %vm814, %v875, %v876
    %v878 = vrot.slane %v762, 3
    %v879 = vsel %vm814, %v876, %v878
    %v880 = vrot.slane %v358, 3
    %v881 = vrot.slane %v359, 3
    %v882 = vsel %vm814, %v880, %v881
    %v883 = vrot.slane %v763, 3
    %v884 = vsel %vm814, %v881, %v883
    %v885 = vrot.slane %v360, 3
    %v886 = vrot.slane %v361, 3
    %v887 = vsel %vm814, %v885, %v886
    %v888 = vrot.slane %v764, 3
    %v889 = vsel %vm814, %v886, %v888
    %v890 = vrot.slane %v362, 3
    %v891 = vrot.slane %v363, 3
    %v892 = vsel %vm814, %v890, %v891
    %v893 = vrot.slane %v765, 3
    %v894 = vsel %vm814, %v891, %v893
    %v927 = vadd.f32 %v718, %v817
    %v928 = vadd.f32 %v719, %v819
    %v929 = vadd.f32 %v720, %v822
    %v930 = vadd.f32 %v721, %v824
    %v931 = vadd.f32 %v722, %v827
    %v932 = vadd.f32 %v723, %v829
    %v933 = vadd.f32 %v724, %v832
    %v934 = vadd.f32 %v725, %v834
    %v935 = vadd.f32 %v726, %v837
    %v936 = vadd.f32 %v727, %v839
    %v937 = vadd.f32 %v728, %v842
    %v938 = vadd.f32 %v729, %v844
    %v939 = vadd.f32 %v730, %v847
    %v940 = vadd.f32 %v731, %v849
    %v941 = vadd.f32 %v732, %v852
    %v942 = vadd.f32 %v733, %v854
    %v943 = vadd.f32 %v734, %v857
    %v944 = vadd.f32 %v735, %v859
    %v945 = vadd.f32 %v736, %v862
    %v946 = vadd.f32 %v737, %v864
    %v947 = vadd.f32 %v738, %v867
    %v948 = vadd.f32 %v739, %v869
    %v949 = vadd.f32 %v740, %v872
    %v950 = vadd.f32 %v741, %v874
    %v951 = vadd.f32 %v742, %v877
    %v952 = vadd.f32 %v743, %v879
    %v953 = vadd.f32 %v744, %v882
    %v954 = vadd.f32 %v745, %v884
    %v955 = vadd.f32 %v746, %v887
    %v956 = vadd.f32 %v747, %v889
    %v957 = vadd.f32 %v748, %v892
    %v958 = vadd.f32 %v749, %v894
    %959 = vst [vmem:[#allocation5] sm:$0xff] %v927
    %960 = vst [vmem:[#allocation5 + $0x8] sm:$0xff] %v928
    %961 = vst [vmem:[#allocation5 + $0x10] sm:$0xff] %v929
    %962 = vst [vmem:[#allocation5 + $0x18] sm:$0xff] %v930
    %963 = vst [vmem:[#allocation5 + $0x20] sm:$0xff] %v931
    %964 = vst [vmem:[#allocation5 + $0x28] sm:$0xff] %v932
    %965 = vst [vmem:[#allocation5 + $0x30] sm:$0xff] %v933
    %966 = vst [vmem:[#allocation5 + $0x38] sm:$0xff] %v934
    %967 = vst [vmem:[#allocation5 + $0x40] sm:$0xff] %v935
    %968 = vst [vmem:[#allocation5 + $0x48] sm:$0xff] %v936
    %969 = vst [vmem:[#allocation5 + $0x50] sm:$0xff] %v937
    %970 = vst [vmem:[#allocation5 + $0x58] sm:$0xff] %v938
    %971 = vst [vmem:[#allocation5 + $0x60] sm:$0xff] %v939
    %972 = vst [vmem:[#allocation5 + $0x68] sm:$0xff] %v940
    %973 = vst [vmem:[#allocation5 + $0x70] sm:$0xff] %v941
    %974 = vst [vmem:[#allocation5 + $0x78] sm:$0xff] %v942
    %975 = vst [vmem:[#allocation5 + $0x80] sm:$0xff] %v943
    %976 = vst [vmem:[#allocation5 + $0x88] sm:$0xff] %v944
    %977 = vst [vmem:[#allocation5 + $0x90] sm:$0xff] %v945
    %978 = vst [vmem:[#allocation5 + $0x98] sm:$0xff] %v946
    %979 = vst [vmem:[#allocation5 + $0xa0] sm:$0xff] %v947
    %980 = vst [vmem:[#allocation5 + $0xa8] sm:$0xff] %v948
    %981 = vst [vmem:[#allocation5 + $0xb0] sm:$0xff] %v949
    %982 = vst [vmem:[#allocation5 + $0xb8] sm:$0xff] %v950
    %983 = vst [vmem:[#allocation5 + $0xc0] sm:$0xff] %v951
    %984 = vst [vmem:[#allocation5 + $0xc8] sm:$0xff] %v952
    %985 = vst [vmem:[#allocation5 + $0xd0] sm:$0xff] %v953
    %986 = vst [vmem:[#allocation5 + $0xd8] sm:$0xff] %v954
    %987 = vst [vmem:[#allocation5 + $0xe0] sm:$0xff] %v955
    %988 = vst [vmem:[#allocation5 + $0xe8] sm:$0xff] %v956
    %989 = vst [vmem:[#allocation5 + $0xf0] sm:$0xff] %v957
    %990 = vst [vmem:[#allocation5 + $0xf8] sm:$0xff] %v958
    // Predicated region
    $region10: #{tpu_custom_call.1} parent=1 // pred_check
      _
    $region11: #{tpu_custom_call.1} parent=1 // pred_check_branch
      %992 = sbr.rel (0) target = $region13
    $region12: #{tpu_custom_call.1} parent=1 // pred_region
      %s994 = ssub.s32 4096, 4096
      %995 = vsyncadd [#allocation4], %s994
      %s996 = sshll.u32 [#allocation5], 4
      %s997 = int_to_ptr.vmem [resolvable:$true] %s996
      %1002 = dma.vmem_to_hbm [thread:$0]  %s997, 4096, %s1, [#allocation4], 128, 128, 8
    $region13: #{tpu_custom_call.1} parent=1 // pred_fallthru
      _
    // Predicated region
    $region14: #{tpu_custom_call.1} parent=1 // pred_check
      _
    $region15: #{tpu_custom_call.1} parent=1 // pred_check_branch
      %1004 = sbr.rel (0) target = $region17
    $region16: #{tpu_custom_call.1} parent=1 // pred_region
      %1005 = dma.done [#allocation4], 4096
    $region17: #{tpu_custom_call.1} parent=1 // pred_fallthru
      _
    %1006 = vsyncpa [#allocation3], 1
    %1007 = vsyncpa [#allocation4], 1

</llo_original>
